<compile_context>
chip_gen: v6e
topology: v6e:2x2x1
jax: 0.10.0
libtpu: 0.0.40
codegen_flags: <defaults>
</compile_context>

<pallas_src>
import functools

import jax
import jax.numpy as jnp
from jax import lax
from jax.experimental import pallas as pl
from jax.experimental.pallas import tpu as pltpu

_LANE = 128
_PACKED_CHUNK_BYTES = 64 * 1024        # in-kernel chunk (bounds live vreg pressure)
_PACKED_TILE_BYTES = 2 * 1024 * 1024   # per-grid-step input DMA (double buffered)
_SIMPLE_TILE_BYTES = 4 * 1024 * 1024   # lane-padded VMEM budget for the general kernel
_VMEM_LIMIT = 32 * 1024 * 1024         # explicit scoped-VMEM limit (safe on v5e/v6e/v7x)


def _round_up(a: int, b: int) -> int:
    return -(-a // b) * b


# ---------------------------------------------------------------------------
# One-time probe: which way does pltpu.roll rotate the lane axis?
#   +1 -> jnp.roll convention: roll(x, k)[i] == x[i - k]
#   -1 -> opposite:            roll(x, k)[i] == x[i + k]
#    0 -> unknown / unavailable -> packed kernel disabled (general kernel only)
# ---------------------------------------------------------------------------
_ROLL_DIR = None


def _roll_probe_kernel(x_ref, o_ref):
    o_ref[...] = pltpu.roll(x_ref[...], 1, axis=1)


def _roll_direction() -> int:
    global _ROLL_DIR
    if _ROLL_DIR is None:
        try:
            x = jnp.broadcast_to(
                jnp.arange(_LANE, dtype=jnp.float32)[None, :], (8, _LANE))
            out = pl.pallas_call(
                _roll_probe_kernel,
                out_shape=jax.ShapeDtypeStruct((8, _LANE), jnp.float32),
            )(x)
            first = float(jax.device_get(out)[0, 0])
            if first == float(_LANE - 1):
                _ROLL_DIR = 1
            elif first == 1.0:
                _ROLL_DIR = -1
            else:
                _ROLL_DIR = 0
        except Exception:
            # Narrow, one-time capability probe (NOT the real kernel): if roll is
            # unavailable we fall back to the general kernel everywhere.
            _ROLL_DIR = 0
    return _ROLL_DIR


# ---------------------------------------------------------------------------
# Packed kernel: x_ref is (tile_rows, 128) of dense packed rows, each holding
# `groups` reduction groups of `width` lanes; o_ref is (tile_rows, groups).
# ---------------------------------------------------------------------------
def _packed_max_kernel(x_ref, o_ref, *, width, groups, chunk_rows, n_chunks,
                       direction):
    # After the tree-reduce, group g's max sits at lane g*width + c0.
    c0 = width - 1 if direction > 0 else 0

    lanes = lax.broadcasted_iota(jnp.int32, (1, _LANE), 1)
    # Static compaction schedule: step t merges adjacent runs of 2^t maxima.
    comp = []
    span = 1
    while span < groups:
        delta = (width - 1) * span              # how far the odd run moves (toward lane 0)
        k = (-direction * delta) % _LANE        # roll amount so rolled[i] == acc[i + delta]
        period = 2 * span * width               # merged super-block width in lanes
        rel = (lanes - c0) % period
        comp.append((k, (rel >= span) & (rel < 2 * span)))
        span *= 2
    final_k = (-direction * c0) % _LANE if c0 else 0   # move run [c0, c0+G) -> [0, G)

    def body(ci, carry):
        r0 = pl.multiple_of(ci * chunk_rows, chunk_rows)
        acc = x_ref[pl.ds(r0, chunk_rows), :]
        # Lane tree-reduce on dense vregs (XLU roll + VPU max only).
        s = width // 2
        while s >= 1:
            acc = jnp.maximum(acc, pltpu.roll(acc, s, axis=1))
            s //= 2
        # Lane compaction: gather the `groups` maxima into a contiguous run.
        for k, mask in comp:
            acc = jnp.where(mask, pltpu.roll(acc, k, axis=1), acc)
        if final_k:
            acc = pltpu.roll(acc, final_k, axis=1)
        o_ref[pl.ds(r0, chunk_rows), :] = acc[:, :groups]
        return carry

    lax.fori_loop(0, n_chunks, body, 0)


def _packed_max(xf, R, W, dtype, direction):
    itemsize = jnp.dtype(dtype).itemsize
    groups = _LANE // W
    rows = R // groups                       # caller guarantees R % groups == 0
    xp = xf.reshape(rows, _LANE)             # free, row-major view (no copy)

    row_bytes = _LANE * itemsize
    chunk_rows = max(8, (_PACKED_CHUNK_BYTES // row_bytes) // 8 * 8)
    chunk_rows = min(chunk_rows, _round_up(rows, 8))
    tile_rows = max(chunk_rows,
                    (_PACKED_TILE_BYTES // row_bytes) // chunk_rows * chunk_rows)
    # v7x megacore: keep >= 2 grid tiles whenever there is enough work.
    if tile_rows >= rows and rows > 2 * chunk_rows:
        tile_rows = _round_up(pl.cdiv(rows, 2), chunk_rows)
    tile_rows = min(tile_rows, _round_up(rows, chunk_rows))
    num_tiles = pl.cdiv(rows, tile_rows)     # partial last block handled by Pallas
    n_chunks = tile_rows // chunk_rows

    kernel = functools.partial(
        _packed_max_kernel, width=W, groups=groups, chunk_rows=chunk_rows,
        n_chunks=n_chunks, direction=direction)

    out = pl.pallas_call(
        kernel,
        out_shape=jax.ShapeDtypeStruct((rows, groups), dtype),
        grid=(num_tiles,),
        in_specs=[pl.BlockSpec((tile_rows, _LANE), lambda i: (i, 0))],
        out_specs=pl.BlockSpec((tile_rows, groups), lambda i: (i, 0)),
        compiler_params=pltpu.CompilerParams(
            dimension_semantics=("parallel",),
            vmem_limit_bytes=_VMEM_LIMIT),
        cost_estimate=pl.CostEstimate(
            flops=R * W, transcendentals=0,
            bytes_accessed=(R * W + R) * itemsize),
    )(xp)
    return out.reshape(R, 1)                 # free reshape (row-major order preserved)


# ---------------------------------------------------------------------------
# General kernel: plain (rows, W) -> (rows, 1) lane reduce, row-tiled.
# Used only for shapes the packed kernel cannot express without a copy.
# ---------------------------------------------------------------------------
def _simple_max_kernel(x_ref, o_ref):
    o_ref[...] = jnp.max(x_ref[...], axis=-1, keepdims=True)


def _simple_max(xf, R, W, dtype):
    itemsize = jnp.dtype(dtype).itemsize
    padded_row_bytes = _round_up(W, _LANE) * itemsize
    tile_rows = max(8, (_SIMPLE_TILE_BYTES // padded_row_bytes) // 8 * 8)
    if tile_rows >= R and R > 16:            # >= 2 tiles for v7x megacore if possible
        tile_rows = _round_up(pl.cdiv(R, 2), 8)
    tile_rows = min(tile_rows, _round_up(R, 8))
    num_tiles = pl.cdiv(R, tile_rows)        # partial last block handled by Pallas

    out = pl.pallas_call(
        _simple_max_kernel,
        out_shape=jax.ShapeDtypeStruct((R, 1), dtype),
        grid=(num_tiles,),
        in_specs=[pl.BlockSpec((tile_rows, W), lambda i: (i, 0))],
        out_specs=pl.BlockSpec((tile_rows, 1), lambda i: (i, 0)),
        compiler_params=pltpu.CompilerParams(
            dimension_semantics=("parallel",),
            vmem_limit_bytes=_VMEM_LIMIT),
        cost_estimate=pl.CostEstimate(
            flops=R * W, transcendentals=0,
            bytes_accessed=(R * W + R) * itemsize),
    )(xf)
    return out


def max_over_width(x: jax.Array) -> jax.Array:
    """torch.amax(x, axis=3, keepdim=True) for an NCHW array."""
    N, C, H, W = x.shape
    if W == 1:
        return x                              # amax over a singleton axis is the identity
    R = N * C * H
    xf = x.reshape(R, W)                      # free reshape of a contiguous array

    # Packed path requires: W | 128 with G >= 2, R % G == 0 (so the packing
    # reshape is free), and a known pltpu.roll direction.
    use_packed = (2 <= W <= 64 and _LANE % W == 0
                  and R % (_LANE // W) == 0
                  and _roll_direction() != 0)
    if use_packed:
        out_flat = _packed_max(xf, R, W, x.dtype, _roll_direction())
    else:
        # TODO(synk): widths that do not divide 128 (or row counts not divisible
        # by G) stay on the lane-sparse general kernel; packing them densely
        # would need an extra HBM copy.
        out_flat = _simple_max(xf, R, W, x.dtype)
    return out_flat.reshape(N, C, H, 1)


if __name__ == "__main__":
    key = jax.random.PRNGKey(0)

    # Shape implied by the module's forward (NCHW, reduce over W) -> packed path.
    x = jax.random.normal(key, (2, 4, 16, 16), dtype=jnp.float32)
    out = max_over_width(x)
    jax.block_until_ready(out)
    ref = jnp.max(x, axis=3, keepdims=True)
    assert out.shape == ref.shape == (2, 4, 16, 1), out.shape
    assert out.dtype == x.dtype
    assert bool(jnp.array_equal(out, ref)), "mismatch vs reference (packed path)"

    # A second, misaligned shape exercises the general kernel + partial blocks.
    x2 = jax.random.normal(jax.random.PRNGKey(0), (2, 3, 5, 16), dtype=jnp.float32)
    out2 = max_over_width(x2)
    jax.block_until_ready(out2)
    assert bool(jnp.array_equal(out2, jnp.max(x2, axis=3, keepdims=True))), \
        "mismatch vs reference (general path)"

    print("KERNEL_OK")
</pallas_src>

<mosaic_0001>
module attributes {stable_mosaic.version = 11 : i64} {
  func.func @_roll_probe_kernel(%arg0: memref<8x128xf32, #tpu.memory_space<vmem>>, %arg1: memref<8x128xf32, #tpu.memory_space<vmem>>) attributes {dimension_semantics = [], scalar_prefetch = 0 : i64, scratch_operands = 0 : i64, tpu.core_type = #tpu.core_type<tc>} {
    %c0 = arith.constant 0 : index
    %c0_0 = arith.constant 0 : index
    %0 = vector.load %arg0[%c0, %c0_0] : memref<8x128xf32, #tpu.memory_space<vmem>>, vector<8x128xf32>
    %c1_i32 = arith.constant 1 : i32
    %1 = tpu.dynamic_rotate %0 by %c1_i32 dim 1 : vector<8x128xf32>, i32 -> vector<8x128xf32>
    %c0_1 = arith.constant 0 : index
    %c0_2 = arith.constant 0 : index
    %2 = vector.load %arg1[%c0_1, %c0_2] : memref<8x128xf32, #tpu.memory_space<vmem>>, vector<8x128xf32>
    tpu.vector_store %arg1[%c0_1, %c0_2], %1 {strides = array<i32>} : memref<8x128xf32, #tpu.memory_space<vmem>>, vector<8x128xf32>,
    return
  }
}

module attributes {stable_mosaic.version = 11 : i64} {
  func.func @_simple_max_kernel(%arg0: i32, %arg1: memref<64x16xf32, #tpu.memory_space<vmem>>, %arg2: memref<64x1xf32, #tpu.memory_space<vmem>>) attributes {dimension_semantics = [#tpu.dimension_semantics<parallel>], iteration_bounds = array<i64: 2>, scalar_prefetch = 0 : i64, scratch_operands = 0 : i64, tpu.core_type = #tpu.core_type<tc>, window_params = [{transform_indices = @transform_0, window_bounds = array<i64: 64, 16>}, {transform_indices = @transform_1, window_bounds = array<i64: 64, 1>}]} {
    %c0 = arith.constant 0 : index
    %c0_0 = arith.constant 0 : index
    %0 = vector.load %arg1[%c0, %c0_0] : memref<64x16xf32, #tpu.memory_space<vmem>>, vector<64x16xf32>
    %cst = arith.constant dense<0xFF800000> : vector<64xf32>
    %1 = vector.multi_reduction <maximumf>, %0, %cst [1] : vector<64x16xf32> to vector<64xf32>
    %2 = vector.shape_cast %1 : vector<64xf32> to vector<64x1xf32>
    %c0_1 = arith.constant 0 : index
    %c0_2 = arith.constant 0 : index
    %3 = vector.load %arg2[%c0_1, %c0_2] : memref<64x1xf32, #tpu.memory_space<vmem>>, vector<64x1xf32>
    tpu.vector_store %arg2[%c0_1, %c0_2], %2 {strides = array<i32>} : memref<64x1xf32, #tpu.memory_space<vmem>>, vector<64x1xf32>,
    return
  }
  func.func @transform_0(%arg0: i32) -> (i32, i32) {
    %c0_i32 = arith.constant 0 : i32
    %c0_i32_0 = arith.constant 0 : i32
    return %arg0, %c0_i32 : i32, i32
  }
  func.func @transform_1(%arg0: i32) -> (i32, i32) {
    %c0_i32 = arith.constant 0 : i32
    %c0_i32_0 = arith.constant 0 : i32
    return %arg0, %c0_i32 : i32, i32
  }
}

</mosaic_0001>

<llo_original>
// kernel: tpu_custom_call.1
$region0: #{tpu_custom_call.1}
  #allocation0 [shape = 'u32[]', space=smem, size = 0x4, offset = 0x4, fixed_abs, tag = 'smem constant byte address 0x4 - core index']
  #allocation1 [shape = 'u32[144,128]{1,0:T(1,128)}', space=vmem, size = 0x12000, scoped, tag = 'internal scratch']
  %s0 = inlined_call_operand.hbm [shape: f32[8,128], index: 0, kind: input, shape index: {}]
  %s1 = inlined_call_operand.hbm [shape: f32[8,128], index: 1, kind: output, shape index: {}]
  %s2 = sld [smem:[#allocation0]]
  $region18: #{tpu_custom_call.1} parent=0
    _
  %s4 = ssub.s32 1, %s2
  %s5 = scalar_select 0, %s4, %s2
  $region1: #{tpu_custom_call.1} parent=0
    #allocation2 [shape = 'u8[4096]{0}', space=vmem, size = 0x1000, scoped, tag = 'input window, operand 0, single buffered']
    #allocation3 [shape = 's32[1]{0}', space=sflag, size = 0x4, scoped, tag = 'scoped memory for tpu_custom_call.1']
    #allocation4 [shape = 's32[1]{0}', space=sflag, size = 0x4, scoped, tag = 'scoped memory for tpu_custom_call.1']
    #allocation5 [shape = 'u8[4096]{0}', space=vmem, size = 0x1000, scoped, tag = 'output window, operand 0, single buffered']
    %6 = vsyncpa [#allocation3], 0
    %7 = vsyncpa [#allocation4], 0
    // Predicated region
    $region2: #{tpu_custom_call.1} parent=1 // pred_check
      _
    $region3: #{tpu_custom_call.1} parent=1 // pred_check_branch
      %9 = sbr.rel (0) target = $region5
    $region4: #{tpu_custom_call.1} parent=1 // pred_region
      %s11 = ssub.s32 128, 128
      %12 = vsyncadd [#allocation3], %s11
      %s14 = sshll.u32 [#allocation2], 4
      %s15 = int_to_ptr.vmem [resolvable:$true] %s14
      %17 = dma.hbm_to_vmem [thread:$0]  %s0, 128, %s15, [#allocation3]
    $region5: #{tpu_custom_call.1} parent=1 // pred_fallthru
      _
    // Predicated region
    $region6: #{tpu_custom_call.1} parent=1 // pred_check
      _
    $region7: #{tpu_custom_call.1} parent=1 // pred_check_branch
      %19 = sbr.rel (0) target = $region9
    $region8: #{tpu_custom_call.1} parent=1 // pred_region
      %20 = dma.done [#allocation3], 128
    $region9: #{tpu_custom_call.1} parent=1 // pred_fallthru
      _
    %v21 = vld [vmem:[#allocation2] sm:$0xff]
    %22 = vrot.lane.b32.xlu0 %v21, 1
    %v23 = vpop.permute.xlu0 %22
    %24 = vst [vmem:[#allocation5] sm:$0xff] %v23
    // Predicated region
    $region10: #{tpu_custom_call.1} parent=1 // pred_check
      _
    $region11: #{tpu_custom_call.1} parent=1 // pred_check_branch
      %26 = sbr.rel (0) target = $region13
    $region12: #{tpu_custom_call.1} parent=1 // pred_region
      %s28 = ssub.s32 128, 128
      %29 = vsyncadd [#allocation4], %s28
      %s31 = sshll.u32 [#allocation5], 4
      %s32 = int_to_ptr.vmem [resolvable:$true] %s31
      %34 = dma.vmem_to_hbm [thread:$0]  %s32, 128, %s1, [#allocation4]
    $region13: #{tpu_custom_call.1} parent=1 // pred_fallthru
      _
    // Predicated region
    $region14: #{tpu_custom_call.1} parent=1 // pred_check
      _
    $region15: #{tpu_custom_call.1} parent=1 // pred_check_branch
      %36 = sbr.rel (0) target = $region17
    $region16: #{tpu_custom_call.1} parent=1 // pred_region
      %37 = dma.done [#allocation4], 128
    $region17: #{tpu_custom_call.1} parent=1 // pred_fallthru
      _
    %38 = vsyncpa [#allocation3], 1
    %39 = vsyncpa [#allocation4], 1

// kernel: tpu_custom_call.1
$region0: #{tpu_custom_call.1}
  #allocation0 [shape = 'u32[]', space=smem, size = 0x4, offset = 0x4, fixed_abs, tag = 'smem constant byte address 0x4 - core index']
  #allocation1 [shape = 'u32[144,128]{1,0:T(1,128)}', space=vmem, size = 0x12000, scoped, tag = 'internal scratch']
  %s0 = inlined_call_operand.vmem [shape: f32[128,16], index: 0, kind: input, shape index: {}]
  %s1 = inlined_call_operand.vmem [shape: f32[128,1], index: 1, kind: output, shape index: {}]
  %s2 = sld [smem:[#allocation0]]
  $region37: #{tpu_custom_call.1} parent=0
    _
  %s4 = ssub.s32 1, %s2
  %s5 = scalar_select 0, %s4, %s2
  loop: start=0, step=1, limit=4
  $region2: #{tpu_custom_call.1} parent=0 // loop_pre_header
    _
  $region3: #{tpu_custom_call.1} parent=0 // loop_header
    %s7 = sphi 0, %s11
    %p8 = scmp.ge.s32.totalorder %s7, 4
    %s17 = sphi 0, %s19
    %s20 = sphi 0, %s17
    %s21 = sphi 0, %s20
    %s37 = sphi 0, %s21
    %s43 = sphi 0, %s45
    %s46 = sphi 0, %s43
    %s47 = sphi 0, %s46
    %s63 = sphi 0, %s47
  $region4: #{tpu_custom_call.1} parent=0 // loop_header_branch
    %10 = sbr.rel (%p8) target = $region8
  $region5: #{tpu_custom_call.1} parent=0 // loop_body
    %s12 = ssub.s32 %s7, 1
    %s13 = ssub.s32 %s7, 2
    %s14 = sadd.s32 %s7, 1
    %s15 = ssub.s32 %s7, %s14
    %p16 = scmp.eq.s32.totalorder %s15, 0
    %s18 = sadd.s32 %s17, 1
    %s19 = scalar_select %p16, %s17, %s18
    %p22 = pneg %p16
    %p23 = scmp.eq.s32.totalorder %s7, 1
    %p24 = por %p22, %p23
    %p25 = scmp.ne.s32.totalorder %s17, %s20
    %p26 = scmp.eq.s32.totalorder %s7, 0
    %p27 = por %p25, %p26
    %p28 = scmp.ne.s32.totalorder %s17, %s20
    %p29 = scmp.eq.s32.totalorder %s12, 1
    %p30 = por %p28, %p29
    %p31 = scmp.ne.s32.totalorder %s20, %s21
    %p32 = scmp.eq.s32.totalorder %s12, 0
    %p33 = por %p31, %p32
    %p34 = scmp.ne.s32.totalorder %s20, %s21
    %p35 = scmp.eq.s32.totalorder %s13, 1
    %p36 = por %p34, %p35
    %p38 = scmp.ne.s32.totalorder %s21, %s37
    %p39 = scmp.eq.s32.totalorder %s13, 0
    %p40 = por %p38, %p39
    %s41 = ssub.s32 %s7, %s14
    %p42 = scmp.eq.s32.totalorder %s41, 0
    %s44 = sadd.s32 %s43, 1
    %s45 = scalar_select %p42, %s43, %s44
    %p48 = pneg %p42
    %p49 = scmp.eq.s32.totalorder %s7, 1
    %p50 = por %p48, %p49
    %p51 = scmp.ne.s32.totalorder %s43, %s46
    %p52 = scmp.eq.s32.totalorder %s7, 0
    %p53 = por %p51, %p52
    %p54 = scmp.ne.s32.totalorder %s43, %s46
    %p55 = scmp.eq.s32.totalorder %s12, 1
    %p56 = por %p54, %p55
    %p57 = scmp.ne.s32.totalorder %s46, %s47
    %p58 = scmp.eq.s32.totalorder %s12, 0
    %p59 = por %p57, %p58
    %p60 = scmp.ne.s32.totalorder %s46, %s47
    %p61 = scmp.eq.s32.totalorder %s13, 1
    %p62 = por %p60, %p61
    %p64 = scmp.ne.s32.totalorder %s47, %s63
    %p65 = scmp.eq.s32.totalorder %s13, 0
    %p66 = por %p64, %p65
    %p67 = scmp.le.s32.totalorder 1, %s7
    %p68 = scmp.lt.s32.totalorder %s7, 3
    %p69 = pnand %p67, %p68
    %p70 = pneg %p69
    // Predicated region
    $region9: #{tpu_custom_call.1} parent=5 // pred_check
      _
    $region10: #{tpu_custom_call.1} parent=5 // pred_check_branch
      %72 = sbr.rel (%p69) target = $region12
    $region11: #{tpu_custom_call.1} parent=5 // pred_region
      %s73 = ssub.s32 %s7, 1
    $region12: #{tpu_custom_call.1} parent=5 // pred_fallthru
      _
    %p74 = scmp.lt.s32.totalorder %s7, 2
    // Predicated region
    $region13: #{tpu_custom_call.1} parent=5 // pred_check
      %p75 = pneg %p74
    $region14: #{tpu_custom_call.1} parent=5 // pred_check_branch
      %77 = sbr.rel (%p75) target = $region16
    $region15: #{tpu_custom_call.1} parent=5 // pred_region
      // Predicated region
      $region17: #{tpu_custom_call.1} parent=15 // pred_check
        %p78 = pneg %p27
      $region18: #{tpu_custom_call.1} parent=15 // pred_check_branch
        %80 = sbr.rel (%p78) target = $region20
      $region19: #{tpu_custom_call.1} parent=15 // pred_region
        %s81 = smul.u32 8, %s7
        %p82 = scmp.lt.s32.totalorder %s81, 15
        %s83 = scalar_select %p82, %s81, 15
        %s84 = smul.addr %s83, 8
        %s85 = scalar_lea.vmem %s0, %s84
        %s86 = smul.u32 8, %s7
      $region20: #{tpu_custom_call.1} parent=15 // pred_fallthru
        _
    $region16: #{tpu_custom_call.1} parent=5 // pred_fallthru
      _
    %p87 = scmp.le.s32.totalorder 1, %s7
    %p88 = scmp.lt.s32.totalorder %s7, 3
    %p89 = pnand %p87, %p88
    %p90 = pneg %p89
    // Predicated region
    $region21: #{tpu_custom_call.1} parent=5 // pred_check
      _
    $region22: #{tpu_custom_call.1} parent=5 // pred_check_branch
      %92 = sbr.rel (%p89) target = $region24
    $region23: #{tpu_custom_call.1} parent=5 // pred_region
      %s93 = ssub.s32 %s7, 1
      %s94 = smul.u32 8, %s12
      %p95 = scmp.lt.s32.totalorder %s94, 15
      %s96 = scalar_select %p95, %s94, 15
      %s97 = smul.addr %s96, 8
      %s98 = scalar_lea.vmem %s0, %s97
      %p99 = pneg %p33
      %p100 = pneg %p30
      %p101 = pneg %p59
      %p102 = pneg %p56
      %s103 = smul.u32 8, %s12
      %p104 = scmp.lt.s32.totalorder %s103, 15
      %s105 = scalar_select %p104, %s103, 15
      %s106 = smul.addr %s105, 8
      %s107 = scalar_lea.vmem %s1, %s106
      %s108 = smul.u32 8, %s12
      %p109 = scmp.lt.s32.totalorder %s108, 15
      %s110 = scalar_select %p109, %s108, 15
      %s111 = smul.addr %s110, 8
      %s112 = scalar_lea.vmem %s0, %s111
      %s113 = smul.u32 8, %s12
      %s114 = smul.u32 8, %s12
      %p115 = scmp.lt.s32.totalorder %s114, 15
      %s116 = scalar_select %p115, %s114, 15
      %s117 = smul.addr %s116, 8
      %s118 = scalar_lea.vmem %s1, %s117
      %s119 = smul.u32 8, %s12
      %v120 = vld [vmem:[%s112] sm:$0xff]
      %v121 = vld [vmem:[%s112 + $0x8] sm:$0xff]
      %v122 = vld [vmem:[%s112 + $0x10] sm:$0xff]
      %v123 = vld [vmem:[%s112 + $0x18] sm:$0xff]
      %v124 = vld [vmem:[%s112 + $0x20] sm:$0xff]
      %v125 = vld [vmem:[%s112 + $0x28] sm:$0xff]
      %v126 = vld [vmem:[%s112 + $0x30] sm:$0xff]
      %v127 = vld [vmem:[%s112 + $0x38] sm:$0xff]
      %vm128 = vcmask 130048
      %v129 = vsel %vm128, %v120, -inf
      %130 = vmax.xlane.f32.xlu0 %v129
      %v131 = vpop.xlane.xlu0 %130
      %v132 = vsel %vm128, %v121, -inf
      %133 = vmax.xlane.f32.xlu0 %v132
      %v134 = vpop.xlane.xlu0 %133
      %v135 = vsel %vm128, %v122, -inf
      %136 = vmax.xlane.f32.xlu0 %v135
      %v137 = vpop.xlane.xlu0 %136
      %v138 = vsel %vm128, %v123, -inf
      %139 = vmax.xlane.f32.xlu0 %v138
      %v140 = vpop.xlane.xlu0 %139
      %v141 = vsel %vm128, %v124, -inf
      %142 = vmax.xlane.f32.xlu0 %v141
      %v143 = vpop.xlane.xlu0 %142
      %v144 = vsel %vm128, %v125, -inf
      %145 = vmax.xlane.f32.xlu0 %v144
      %v146 = vpop.xlane.xlu0 %145
      %v147 = vsel %vm128, %v126, -inf
      %148 = vmax.xlane.f32.xlu0 %v147
      %v149 = vpop.xlane.xlu0 %148
      %v150 = vsel %vm128, %v127, -inf
      %151 = vmax.xlane.f32.xlu0 %v150
      %v152 = vpop.xlane.xlu0 %151
      %vm153 = vcmask 7168
      %154 = vst.msk [vmem:[%s118] sm:$0xff] %vm153, %v131
      %155 = vst.msk [vmem:[%s118 + $0x8] sm:$0xff] %vm153, %v134
      %156 = vst.msk [vmem:[%s118 + $0x10] sm:$0xff] %vm153, %v137
      %157 = vst.msk [vmem:[%s118 + $0x18] sm:$0xff] %vm153, %v140
      %158 = vst.msk [vmem:[%s118 + $0x20] sm:$0xff] %vm153, %v143
      %159 = vst.msk [vmem:[%s118 + $0x28] sm:$0xff] %vm153, %v146
      %160 = vst.msk [vmem:[%s118 + $0x30] sm:$0xff] %vm153, %v149
      %161 = vst.msk [vmem:[%s118 + $0x38] sm:$0xff] %vm153, %v152
      %s162 = smul.u32 8, %s12
      %p163 = scmp.lt.s32.totalorder %s162, 15
      %s164 = scalar_select %p163, %s162, 15
      %s165 = smul.addr %s164, 8
      %s166 = scalar_lea.vmem %s1, %s165
      // Predicated region
      $region25: #{tpu_custom_call.1} parent=23 // pred_check
        %p167 = pneg %p56
      $region26: #{tpu_custom_call.1} parent=23 // pred_check_branch
        %169 = sbr.rel (%p167) target = $region28
      $region27: #{tpu_custom_call.1} parent=23 // pred_region
        %s170 = smul.u32 8, %s12
      $region28: #{tpu_custom_call.1} parent=23 // pred_fallthru
        _
    $region24: #{tpu_custom_call.1} parent=5 // pred_fallthru
      _
    %p171 = scmp.le.s32.totalorder 2, %s7
    // Predicated region
    $region29: #{tpu_custom_call.1} parent=5 // pred_check
      %p172 = pneg %p171
    $region30: #{tpu_custom_call.1} parent=5 // pred_check_branch
      %174 = sbr.rel (%p172) target = $region32
    $region31: #{tpu_custom_call.1} parent=5 // pred_region
      %s175 = ssub.s32 %s7, 2
      // Predicated region
      $region33: #{tpu_custom_call.1} parent=31 // pred_check
        %p176 = pneg %p62
      $region34: #{tpu_custom_call.1} parent=31 // pred_check_branch
        %178 = sbr.rel (%p176) target = $region36
      $region35: #{tpu_custom_call.1} parent=31 // pred_region
        %s179 = smul.u32 8, %s13
        %p180 = scmp.lt.s32.totalorder %s179, 15
        %s181 = scalar_select %p180, %s179, 15
        %s182 = smul.addr %s181, 8
        %s183 = scalar_lea.vmem %s1, %s182
      $region36: #{tpu_custom_call.1} parent=31 // pred_fallthru
        _
    $region32: #{tpu_custom_call.1} parent=5 // pred_fallthru
      _
  $region6: #{tpu_custom_call.1} parent=0 // loop_footer
    %s11 = sadd.s32 1, %s7
  $region7: #{tpu_custom_call.1} parent=0 // loop_footer_branch
    %6 = sbr.rel target = $region3
  $region8: #{tpu_custom_call.1} parent=0 // loop_exit
    _

</llo_original>
